<compile_context>
chip_gen: v7x
topology: tpu7x:2x2x1
jax: 0.10.0
libtpu: 0.0.40
codegen_flags: <defaults>
</compile_context>

<pallas_src>
import functools

import jax
import jax.numpy as jnp
from jax import lax
from jax.experimental import pallas as pl
from jax.experimental.pallas import tpu as pltpu


def _se_kernel(x_ref, w1_ref, w2_ref, o_ref, *, inv_hw: float):
    # x_ref / o_ref: [BB, C, HW]    w1_ref: [HID, C]    w2_ref: [C, HID]

    # ---- squeeze: global average pool over the spatial (lane) axis ----------
    # Accumulate in f32 via dtype=; the x tile itself is never materialized as
    # a full f32 slab (matters for bf16 inputs / v7x VMEM).
    pooled = jnp.sum(x_ref[...], axis=-1, dtype=jnp.float32) * jnp.float32(inv_hw)  # [BB, C]

    # ---- excitation: Linear(C->HID, no bias) + ReLU + Linear(HID->C) + sigmoid
    w1 = w1_ref[...].astype(jnp.float32)                           # [HID, C]
    w2 = w2_ref[...].astype(jnp.float32)                           # [C, HID]
    # h = relu(pooled @ w1.T): contract the C axes directly, no materialized .T
    h = lax.dot_general(pooled, w1, (((1,), (1,)), ((), ())),
                        preferred_element_type=jnp.float32)        # [BB, HID]
    h = jnp.maximum(h, 0.0)
    # g = sigmoid(h @ w2.T): contract the HID axes directly
    g = lax.dot_general(h, w2, (((1,), (1,)), ((), ())),
                        preferred_element_type=jnp.float32)        # [BB, C]
    g = jax.nn.sigmoid(g).astype(o_ref.dtype)                      # tiny [BB, C]

    # ---- scale: second VMEM read of x in its native dtype, native-dtype mul --
    o_ref[...] = x_ref[...] * g[:, :, None]


def _vmem_limit_bytes() -> int:
    """Scoped-VMEM limit to request: ~3/4 of physical VMEM, capped at 64 MiB.

    v5e/v6e (128 MiB physical) -> 64 MiB; v7x (64 MiB physical) -> 48 MiB.
    Falls back to a conservative 48 MiB if the hardware query is unavailable.
    """
    try:
        cap = int(pltpu.get_tpu_info().vmem_capacity_bytes)
    except Exception:
        cap = 64 << 20
    return int(min(cap * 3 // 4, 64 << 20))


def se_block(x: jax.Array, w1: jax.Array, w2: jax.Array) -> jax.Array:
    """Pallas implementation of SE_Block.forward.

    x : [B, C, H, W]
    w1: [C//r, C]   (nn.Linear(c, c//r, bias=False).weight)
    w2: [C, C//r]   (nn.Linear(c//r, c, bias=False).weight)
    returns [B, C, H, W]
    """
    B, C, H, W = x.shape
    HID = w1.shape[0]
    assert w1.shape == (HID, C) and w2.shape == (C, HID)
    HW = H * W
    # TODO(synk): for small feature maps (H*W not a multiple of 128) fold
    # spatial into the lane dim by grouping channels to keep stores lane-dense.

    x2 = x.reshape(B, C, HW)                      # free reshape, no transpose

    # ---- per-generation tile budgeting --------------------------------------
    vmem_limit = _vmem_limit_bytes()
    weight_bytes = w1.size * w1.dtype.itemsize + w2.size * w2.dtype.itemsize
    headroom = 4 << 20
    # 2 double-buffered input tiles + 2 double-buffered output tiles in flight.
    tile_budget = (vmem_limit - 2 * weight_bytes - headroom) // 4
    per_sample = C * HW * x2.dtype.itemsize
    if per_sample > tile_budget:
        # TODO(synk): two-pass pool-then-scale variant that also tiles H*W for
        # feature maps whose [C, H*W] slab does not fit scoped VMEM (v7x 64 MiB).
        raise ValueError(
            f"SE_Block fused kernel needs {per_sample} bytes per sample resident "
            f"in VMEM but the pipelined tile budget is {tile_budget} bytes; "
            f"feature map too large for the single-pass path.")

    bb = max(1, min(B, tile_budget // per_sample))
    if B >= 2:
        # Keep >= 2 grid steps so the "parallel" batch axis shards across both
        # TensorCores on v7x (each TC gets its own share of HBM bandwidth).
        bb = min(bb, pl.cdiv(B, 2))
    grid = (pl.cdiv(B, bb),)   # last block may be partial; rows are independent

    kernel = functools.partial(_se_kernel, inv_hw=1.0 / float(HW))

    x_spec = pl.BlockSpec((bb, C, HW), lambda b: (b, 0, 0))
    w1_spec = pl.BlockSpec((HID, C), lambda b: (0, 0))
    w2_spec = pl.BlockSpec((C, HID), lambda b: (0, 0))

    out = pl.pallas_call(
        kernel,
        out_shape=jax.ShapeDtypeStruct((B, C, HW), x.dtype),
        grid_spec=pltpu.PrefetchScalarGridSpec(
            num_scalar_prefetch=0,
            grid=grid,
            in_specs=[x_spec, w1_spec, w2_spec],
            out_specs=x_spec,
        ),
        compiler_params=pltpu.CompilerParams(
            dimension_semantics=("parallel",),
            vmem_limit_bytes=vmem_limit,
        ),
        # Note: could pass input_output_aliases={0: 0} to donate x when the
        # caller no longer needs it; left off here so the demo can reuse x.
    )(x2, w1, w2)

    return out.reshape(B, C, H, W)


def _reference(x: jax.Array, w1: jax.Array, w2: jax.Array) -> jax.Array:
    """Pure-JAX reference mirroring the PyTorch forward."""
    y = jnp.mean(x, axis=(2, 3))                       # [B, C]
    y = jnp.maximum(y @ w1.T, 0.0)                     # [B, HID]
    y = jax.nn.sigmoid(y @ w2.T)                       # [B, C]
    return x * y[:, :, None, None]


if __name__ == "__main__":
    # Small shapes consistent with the module: B=2, C=64, r=16 (hidden=4), 16x16
    B, C, r, H, W = 2, 64, 16, 16, 16
    HID = C // r
    key = jax.random.PRNGKey(0)
    kx, k1, k2 = jax.random.split(key, 3)
    x = jax.random.normal(kx, (B, C, H, W), dtype=jnp.float32)
    w1 = jax.random.normal(k1, (HID, C), dtype=jnp.float32) * 0.1
    w2 = jax.random.normal(k2, (C, HID), dtype=jnp.float32) * 0.1

    out = se_block(x, w1, w2)
    out = jax.block_until_ready(out)

    ref = _reference(x, w1, w2)
    assert out.shape == x.shape, out.shape
    err = jnp.max(jnp.abs(out - ref))
    assert jnp.allclose(out, ref, atol=1e-5, rtol=1e-5), f"max abs err = {err}"

    print("KERNEL_OK")
</pallas_src>

<mosaic_0001>
module attributes {stable_mosaic.version = 11 : i64} {
  func.func @_se_kernel(%arg0: i32, %arg1: memref<1x64x256xf32, #tpu.memory_space<vmem>>, %arg2: memref<4x64xf32, #tpu.memory_space<vmem>>, %arg3: memref<64x4xf32, #tpu.memory_space<vmem>>, %arg4: memref<1x64x256xf32, #tpu.memory_space<vmem>>) attributes {dimension_semantics = [#tpu.dimension_semantics<parallel>], iteration_bounds = array<i64: 2>, scalar_prefetch = 0 : i64, scratch_operands = 0 : i64, tpu.core_type = #tpu.core_type<tc>, window_params = [{transform_indices = @transform_0, window_bounds = array<i64: 1, 64, 256>}, {pipeline_mode = #tpu.pipeline_mode<synchronous>, transform_indices = @transform_1, window_bounds = array<i64: 4, 64>}, {pipeline_mode = #tpu.pipeline_mode<synchronous>, transform_indices = @transform_2, window_bounds = array<i64: 64, 4>}, {transform_indices = @transform_3, window_bounds = array<i64: 1, 64, 256>}]} {
    %c0 = arith.constant 0 : index
    %c0_0 = arith.constant 0 : index
    %c0_1 = arith.constant 0 : index
    %0 = vector.load %arg1[%c0, %c0_0, %c0_1] : memref<1x64x256xf32, #tpu.memory_space<vmem>>, vector<1x64x256xf32>
    %cst = arith.constant dense<0.000000e+00> : vector<1x64xf32>
    %1 = vector.multi_reduction <add>, %0, %cst [2] : vector<1x64x256xf32> to vector<1x64xf32>
    %cst_2 = arith.constant 3.906250e-03 : f32
    %2 = vector.broadcast %cst_2 : f32 to vector<1x64xf32>
    %3 = arith.mulf %1, %2 : vector<1x64xf32>
    %c0_3 = arith.constant 0 : index
    %c0_4 = arith.constant 0 : index
    %4 = vector.load %arg2[%c0_3, %c0_4] : memref<4x64xf32, #tpu.memory_space<vmem>>, vector<4x64xf32>
    %c0_5 = arith.constant 0 : index
    %c0_6 = arith.constant 0 : index
    %5 = vector.load %arg3[%c0_5, %c0_6] : memref<64x4xf32, #tpu.memory_space<vmem>>, vector<64x4xf32>
    %cst_7 = arith.constant dense<0.000000e+00> : vector<1x4xf32>
    %6 = tpu.matmul %3, %4, %cst_7 {dimension_numbers = #tpu.dot_dimension_numbers<[1], [1], [0], [0], [0, 0, 1, 0], [], []>} : vector<1x64xf32>, vector<4x64xf32>, vector<1x4xf32> -> vector<1x4xf32>
    %cst_8 = arith.constant 0.000000e+00 : f32
    %7 = vector.broadcast %cst_8 : f32 to vector<1x4xf32>
    %8 = arith.maximumf %6, %7 : vector<1x4xf32>
    %cst_9 = arith.constant dense<0.000000e+00> : vector<1x64xf32>
    %9 = tpu.matmul %8, %5, %cst_9 {dimension_numbers = #tpu.dot_dimension_numbers<[1], [1], [0], [0], [0, 0, 1, 0], [], []>} : vector<1x4xf32>, vector<64x4xf32>, vector<1x64xf32> -> vector<1x64xf32>
    %10 = arith.negf %9 : vector<1x64xf32>
    %11 = math.exp %10 : vector<1x64xf32>
    %cst_10 = arith.constant 1.000000e+00 : f32
    %12 = vector.broadcast %cst_10 : f32 to vector<1x64xf32>
    %13 = arith.addf %12, %11 : vector<1x64xf32>
    %14 = arith.divf %12, %13 : vector<1x64xf32>
    %c0_11 = arith.constant 0 : index
    %c0_12 = arith.constant 0 : index
    %c0_13 = arith.constant 0 : index
    %15 = vector.load %arg1[%c0_11, %c0_12, %c0_13] : memref<1x64x256xf32, #tpu.memory_space<vmem>>, vector<1x64x256xf32>
    %16 = vector.shape_cast %14 : vector<1x64xf32> to vector<1x64x1xf32>
    %17 = vector.broadcast %16 : vector<1x64x1xf32> to vector<1x64x256xf32>
    %18 = arith.mulf %15, %17 : vector<1x64x256xf32>
    %c0_14 = arith.constant 0 : index
    %c0_15 = arith.constant 0 : index
    %c0_16 = arith.constant 0 : index
    %19 = vector.load %arg4[%c0_14, %c0_15, %c0_16] : memref<1x64x256xf32, #tpu.memory_space<vmem>>, vector<1x64x256xf32>
    tpu.vector_store %arg4[%c0_14, %c0_15, %c0_16], %18 {strides = array<i32>} : memref<1x64x256xf32, #tpu.memory_space<vmem>>, vector<1x64x256xf32>,
    return
  }
  func.func @transform_0(%arg0: i32) -> (i32, i32, i32) {
    %c0_i32 = arith.constant 0 : i32
    %c0_i32_0 = arith.constant 0 : i32
    %c0_i32_1 = arith.constant 0 : i32
    return %arg0, %c0_i32, %c0_i32_0 : i32, i32, i32
  }
  func.func @transform_1(%arg0: i32) -> (i32, i32) {
    %c0_i32 = arith.constant 0 : i32
    %c0_i32_0 = arith.constant 0 : i32
    %c0_i32_1 = arith.constant 0 : i32
    return %c0_i32, %c0_i32_0 : i32, i32
  }
  func.func @transform_2(%arg0: i32) -> (i32, i32) {
    %c0_i32 = arith.constant 0 : i32
    %c0_i32_0 = arith.constant 0 : i32
    %c0_i32_1 = arith.constant 0 : i32
    return %c0_i32, %c0_i32_0 : i32, i32
  }
  func.func @transform_3(%arg0: i32) -> (i32, i32, i32) {
    %c0_i32 = arith.constant 0 : i32
    %c0_i32_0 = arith.constant 0 : i32
    %c0_i32_1 = arith.constant 0 : i32
    return %arg0, %c0_i32, %c0_i32_0 : i32, i32, i32
  }
}

</mosaic_0001>

<llo_original>
// kernel: tpu_custom_call.1
$region0: #{tpu_custom_call.1}
  #allocation0 [shape = 'u32[]', space=smem, size = 0x4, offset = 0x4, fixed_abs, tag = 'smem constant byte address 0x4 - core index']
  #allocation1 [shape = 'u32[144,128]{1,0:T(1,128)}', space=vmem, size = 0x12000, scoped, tag = 'internal scratch']
  %s0 = inlined_call_operand.hbm [shape: f32[2,64,256], index: 0, kind: input, shape index: {}]
  %s1 = inlined_call_operand.vmem [shape: f32[4,64], index: 1, kind: input, shape index: {}]
  %s2 = inlined_call_operand.vmem [shape: f32[64,4], index: 2, kind: input, shape index: {}]
  %s3 = inlined_call_operand.hbm [shape: f32[2,64,256], index: 3, kind: output, shape index: {}]
  %s4 = sld [smem:[#allocation0]]
  $region49: #{tpu_custom_call.1} parent=0
    _
  %s6 = ssub.s32 1, %s4
  %s7 = scalar_select 0, %s6, %s4
  $region1: #{tpu_custom_call.1} parent=0
    #allocation2 [shape = 'u8[131072]{0}', space=vmem, size = 0x20000, scoped, tag = 'input window, operand 0']
    #allocation3 [shape = 's32[2]{0}', space=sflag, size = 0x8, scoped, tag = 'scoped memory for tpu_custom_call.1']
    #allocation4 [shape = 's32[2]{0}', space=sflag, size = 0x8, scoped, tag = 'scoped memory for tpu_custom_call.1']
    #allocation5 [shape = 'u8[131072]{0}', space=vmem, size = 0x20000, scoped, tag = 'output window, operand 0']
    %8 = vsyncpa [#allocation3], 0
    %s9 = scalar_lea.sflag [#allocation3], 1
    %10 = vsyncpa %s9, 0
    %11 = vsyncpa [#allocation4], 0
    %s12 = scalar_lea.sflag [#allocation4], 1
    %13 = vsyncpa %s12, 0
    loop: start=0, step=1, limit=4
    $region2: #{tpu_custom_call.1} parent=1 // loop_pre_header
      _
    $region3: #{tpu_custom_call.1} parent=1 // loop_header
      %s15 = sphi 0, %s19
      %p16 = scmp.ge.s32.totalorder %s15, 4
      %s25 = sphi 0, %s27
      %s28 = sphi 0, %s25
      %s29 = sphi 0, %s28
      %s45 = sphi 0, %s29
      %s49 = sphi 0, %s49
      %s51 = sphi 0, %s49
      %s52 = sphi 0, %s51
      %s66 = sphi 0, %s52
      %s70 = sphi 0, %s70
      %s72 = sphi 0, %s70
      %s73 = sphi 0, %s72
      %s87 = sphi 0, %s73
      %s93 = sphi 0, %s95
      %s96 = sphi 0, %s93
      %s97 = sphi 0, %s96
      %s113 = sphi 0, %s97
    $region4: #{tpu_custom_call.1} parent=1 // loop_header_branch
      %18 = sbr.rel (%p16) target = $region8
    $region5: #{tpu_custom_call.1} parent=1 // loop_body
      %s20 = ssub.s32 %s15, 1
      %s21 = ssub.s32 %s15, 2
      %s22 = sadd.s32 %s15, 1
      %s23 = ssub.s32 %s15, %s22
      %p24 = scmp.eq.s32.totalorder %s23, 0
      %s26 = sadd.s32 %s25, 1
      %s27 = scalar_select %p24, %s25, %s26
      %p30 = pneg %p24
      %p31 = scmp.eq.s32.totalorder %s15, 1
      %p32 = por %p30, %p31
      %p33 = scmp.ne.s32.totalorder %s25, %s28
      %p34 = scmp.eq.s32.totalorder %s15, 0
      %p35 = por %p33, %p34
      %p36 = scmp.ne.s32.totalorder %s25, %s28
      %p37 = scmp.eq.s32.totalorder %s20, 1
      %p38 = por %p36, %p37
      %p39 = scmp.ne.s32.totalorder %s28, %s29
      %p40 = scmp.eq.s32.totalorder %s20, 0
      %p41 = por %p39, %p40
      %p42 = scmp.ne.s32.totalorder %s28, %s29
      %p43 = scmp.eq.s32.totalorder %s21, 1
      %p44 = por %p42, %p43
      %p46 = scmp.ne.s32.totalorder %s29, %s45
      %p47 = scmp.eq.s32.totalorder %s21, 0
      %p48 = por %p46, %p47
      %s50 = sadd.s32 %s49, 1
      %p53 = scmp.eq.s32.totalorder %s15, 1
      %p54 = scmp.ne.s32.totalorder %s49, %s51
      %p55 = scmp.eq.s32.totalorder %s15, 0
      %p56 = por %p54, %p55
      %p57 = scmp.ne.s32.totalorder %s49, %s51
      %p58 = scmp.eq.s32.totalorder %s20, 1
      %p59 = por %p57, %p58
      %p60 = scmp.ne.s32.totalorder %s51, %s52
      %p61 = scmp.eq.s32.totalorder %s20, 0
      %p62 = por %p60, %p61
      %p63 = scmp.ne.s32.totalorder %s51, %s52
      %p64 = scmp.eq.s32.totalorder %s21, 1
      %p65 = por %p63, %p64
      %p67 = scmp.ne.s32.totalorder %s52, %s66
      %p68 = scmp.eq.s32.totalorder %s21, 0
      %p69 = por %p67, %p68
      %s71 = sadd.s32 %s70, 1
      %p74 = scmp.eq.s32.totalorder %s15, 1
      %p75 = scmp.ne.s32.totalorder %s70, %s72
      %p76 = scmp.eq.s32.totalorder %s15, 0
      %p77 = por %p75, %p76
      %p78 = scmp.ne.s32.totalorder %s70, %s72
      %p79 = scmp.eq.s32.totalorder %s20, 1
      %p80 = por %p78, %p79
      %p81 = scmp.ne.s32.totalorder %s72, %s73
      %p82 = scmp.eq.s32.totalorder %s20, 0
      %p83 = por %p81, %p82
      %p84 = scmp.ne.s32.totalorder %s72, %s73
      %p85 = scmp.eq.s32.totalorder %s21, 1
      %p86 = por %p84, %p85
      %p88 = scmp.ne.s32.totalorder %s73, %s87
      %p89 = scmp.eq.s32.totalorder %s21, 0
      %p90 = por %p88, %p89
      %s91 = ssub.s32 %s15, %s22
      %p92 = scmp.eq.s32.totalorder %s91, 0
      %s94 = sadd.s32 %s93, 1
      %s95 = scalar_select %p92, %s93, %s94
      %p98 = pneg %p92
      %p99 = scmp.eq.s32.totalorder %s15, 1
      %p100 = por %p98, %p99
      %p101 = scmp.ne.s32.totalorder %s93, %s96
      %p102 = scmp.eq.s32.totalorder %s15, 0
      %p103 = por %p101, %p102
      %p104 = scmp.ne.s32.totalorder %s93, %s96
      %p105 = scmp.eq.s32.totalorder %s20, 1
      %p106 = por %p104, %p105
      %p107 = scmp.ne.s32.totalorder %s96, %s97
      %p108 = scmp.eq.s32.totalorder %s20, 0
      %p109 = por %p107, %p108
      %p110 = scmp.ne.s32.totalorder %s96, %s97
      %p111 = scmp.eq.s32.totalorder %s21, 1
      %p112 = por %p110, %p111
      %p114 = scmp.ne.s32.totalorder %s97, %s113
      %p115 = scmp.eq.s32.totalorder %s21, 0
      %p116 = por %p114, %p115
      %p117 = scmp.le.s32.totalorder 1, %s15
      %p118 = scmp.lt.s32.totalorder %s15, 3
      %p119 = pnand %p117, %p118
      %p120 = pneg %p119
      // Predicated region
      $region9: #{tpu_custom_call.1} parent=5 // pred_check
        _
      $region10: #{tpu_custom_call.1} parent=5 // pred_check_branch
        %122 = sbr.rel (%p119) target = $region12
      $region11: #{tpu_custom_call.1} parent=5 // pred_region
        %s123 = ssub.s32 %s15, 1
        // Predicated region
        $region13: #{tpu_custom_call.1} parent=11 // pred_check
          %p124 = pneg %p62
        $region14: #{tpu_custom_call.1} parent=11 // pred_check_branch
          %126 = sbr.rel (%p124) target = $region16
        $region15: #{tpu_custom_call.1} parent=11 // pred_region
          _
        $region16: #{tpu_custom_call.1} parent=11 // pred_fallthru
          _
        // Predicated region
        $region17: #{tpu_custom_call.1} parent=11 // pred_check
          %p127 = pneg %p83
        $region18: #{tpu_custom_call.1} parent=11 // pred_check_branch
          %129 = sbr.rel (%p127) target = $region20
        $region19: #{tpu_custom_call.1} parent=11 // pred_region
          _
        $region20: #{tpu_custom_call.1} parent=11 // pred_fallthru
          _
      $region12: #{tpu_custom_call.1} parent=5 // pred_fallthru
        _
      %p130 = scmp.lt.s32.totalorder %s15, 2
      // Predicated region
      $region21: #{tpu_custom_call.1} parent=5 // pred_check
        %p131 = pneg %p130
      $region22: #{tpu_custom_call.1} parent=5 // pred_check_branch
        %133 = sbr.rel (%p131) target = $region24
      $region23: #{tpu_custom_call.1} parent=5 // pred_region
        // Predicated region
        $region25: #{tpu_custom_call.1} parent=23 // pred_check
          %p134 = pneg %p35
        $region26: #{tpu_custom_call.1} parent=23 // pred_check_branch
          %136 = sbr.rel (%p134) target = $region28
        $region27: #{tpu_custom_call.1} parent=23 // pred_region
          %s137 = sand.u32 %s25, 1
          %s138 = scalar_lea.sflag [#allocation3], %s137
          %s139 = sand.u32 %s25, 1
          %s140 = smul.addr %s139, 128
          %s141 = scalar_lea.vmem [#allocation2], %s140
          %s143 = ssub.s32 2048, 2048
          %144 = vsyncadd %s138, %s143
          %s145 = smul.addr %s15, 16
          %s146 = smul.addr %s145, 128
          %s147 = scalar_lea.hbm %s0, %s146
          %s148 = sshll.u32 %s141, 4
          %s149 = int_to_ptr.vmem [resolvable:$true] %s148
          %154 = dma.hbm_to_vmem [thread:$0]  %s147, 2048, %s149, %s138, 256, 256, 16
        $region28: #{tpu_custom_call.1} parent=23 // pred_fallthru
          _
      $region24: #{tpu_custom_call.1} parent=5 // pred_fallthru
        _
      %p155 = scmp.le.s32.totalorder 1, %s15
      %p156 = scmp.lt.s32.totalorder %s15, 3
      %p157 = pnand %p155, %p156
      %p158 = pneg %p157
      // Predicated region
      $region29: #{tpu_custom_call.1} parent=5 // pred_check
        _
      $region30: #{tpu_custom_call.1} parent=5 // pred_check_branch
        %160 = sbr.rel (%p157) target = $region32
      $region31: #{tpu_custom_call.1} parent=5 // pred_region
        %s161 = ssub.s32 %s15, 1
        %s162 = sand.u32 %s28, 1
        %s163 = scalar_lea.sflag [#allocation3], %s162
        %s164 = sand.u32 %s28, 1
        %s165 = smul.addr %s164, 128
        %s166 = scalar_lea.vmem [#allocation2], %s165
        // Predicated region
        $region33: #{tpu_custom_call.1} parent=31 // pred_check
          %p167 = pneg %p41
        $region34: #{tpu_custom_call.1} parent=31 // pred_check_branch
          %169 = sbr.rel (%p167) target = $region36
        $region35: #{tpu_custom_call.1} parent=31 // pred_region
          %170 = dma.done %s163, 2048
        $region36: #{tpu_custom_call.1} parent=31 // pred_fallthru
          _
        %s171 = sand.u32 %s28, 1
        %s172 = scalar_lea.sflag [#allocation3], %s171
        %s173 = sand.u32 %s28, 1
        %s174 = smul.addr %s173, 128
        %s175 = scalar_lea.vmem [#allocation2], %s174
        %p176 = pneg %p41
        %p177 = pneg %p38
        %p178 = pneg %p62
        %p179 = pneg %p59
        %p180 = pneg %p83
        %p181 = pneg %p80
        %p182 = pneg %p109
        %p183 = pneg %p106
        %s184 = sand.u32 %s96, 1
        %s185 = scalar_lea.sflag [#allocation4], %s184
        %s186 = sand.u32 %s96, 1
        %s187 = smul.addr %s186, 128
        %s188 = scalar_lea.vmem [#allocation5], %s187
        %v189 = vld [vmem:[%s166] sm:$0xff]
        %v190 = vld [vmem:[%s166 + $0x8] sm:$0xff]
        %v191 = vld [vmem:[%s166 + $0x10] sm:$0xff]
        %v192 = vld [vmem:[%s166 + $0x18] sm:$0xff]
        %v193 = vld [vmem:[%s166 + $0x20] sm:$0xff]
        %v194 = vld [vmem:[%s166 + $0x28] sm:$0xff]
        %v195 = vld [vmem:[%s166 + $0x30] sm:$0xff]
        %v196 = vld [vmem:[%s166 + $0x38] sm:$0xff]
        %v197 = vld [vmem:[%s166 + $0x40] sm:$0xff]
        %v198 = vld [vmem:[%s166 + $0x48] sm:$0xff]
        %v199 = vld [vmem:[%s166 + $0x50] sm:$0xff]
        %v200 = vld [vmem:[%s166 + $0x58] sm:$0xff]
        %v201 = vld [vmem:[%s166 + $0x60] sm:$0xff]
        %v202 = vld [vmem:[%s166 + $0x68] sm:$0xff]
        %v203 = vld [vmem:[%s166 + $0x70] sm:$0xff]
        %v204 = vld [vmem:[%s166 + $0x78] sm:$0xff]
        %v205 = vadd.f32 %v189, %v190
        %206 = vadd.xlane.f32.xlu0 %v205
        %v207 = vpop.xlane.xlu0 %206
        %v208 = vadd.f32 %v191, %v192
        %209 = vadd.xlane.f32.xlu0 %v208
        %v210 = vpop.xlane.xlu0 %209
        %v211 = vadd.f32 %v193, %v194
        %212 = vadd.xlane.f32.xlu0 %v211
        %v213 = vpop.xlane.xlu0 %212
        %v214 = vadd.f32 %v195, %v196
        %215 = vadd.xlane.f32.xlu0 %v214
        %v216 = vpop.xlane.xlu0 %215
        %v217 = vadd.f32 %v197, %v198
        %218 = vadd.xlane.f32.xlu0 %v217
        %v219 = vpop.xlane.xlu0 %218
        %v220 = vadd.f32 %v199, %v200
        %221 = vadd.xlane.f32.xlu0 %v220
        %v222 = vpop.xlane.xlu0 %221
        %v223 = vadd.f32 %v201, %v202
        %224 = vadd.xlane.f32.xlu0 %v223
        %v225 = vpop.xlane.xlu0 %224
        %v226 = vadd.f32 %v203, %v204
        %227 = vadd.xlane.f32.xlu0 %v226
        %v228 = vpop.xlane.xlu0 %227
        %v229 = vmul.f32 %v207, 0.00390625
        %v230 = vmul.f32 %v210, 0.00390625
        %v231 = vmul.f32 %v213, 0.00390625
        %v232 = vmul.f32 %v216, 0.00390625
        %v233 = vmul.f32 %v219, 0.00390625
        %v234 = vmul.f32 %v222, 0.00390625
        %v235 = vmul.f32 %v225, 0.00390625
        %v236 = vmul.f32 %v228, 0.00390625
        %v237 = vld [vmem:[%s1] sm:$0xf]
        %v238 = vld [vmem:[%s2] sm:$0xff]
        %v239 = vld [vmem:[%s2 + $0x8] sm:$0xff]
        %v240 = vld [vmem:[%s2 + $0x10] sm:$0xff]
        %v241 = vld [vmem:[%s2 + $0x18] sm:$0xff]
        %v242 = vld [vmem:[%s2 + $0x20] sm:$0xff]
        %v243 = vld [vmem:[%s2 + $0x28] sm:$0xff]
        %v244 = vld [vmem:[%s2 + $0x30] sm:$0xff]
        %v245 = vld [vmem:[%s2 + $0x38] sm:$0xff]
        %v254 = vlaneseq
        %v255 = vand.u32 %v254, 127
        %v256 = vlaneseq
        %v257 = vshrl.u32 %v256, 7
        %v258 = vsub.s32 %v255, %v257
        %v259 = vrot.slane %v229, %v258
        %v260 = vadd.s32 %v255, 4294967288
        %v261 = vlaneseq
        %v262 = vshrl.u32 %v261, 7
        %v263 = vsub.s32 %v260, %v262
        %v264 = vrot.slane %v230, %v263
        %vm265 = vcmask 130112
        %v266 = vsel %vm265, %v264, %v259
        %v267 = vadd.s32 %v255, 4294967280
        %v268 = vlaneseq
        %v269 = vshrl.u32 %v268, 7
        %v270 = vsub.s32 %v267, %v269
        %v271 = vrot.slane %v231, %v270
        %vm272 = vcmask 195712
        %v273 = vsel %vm272, %v271, %v266
        %v274 = vadd.s32 %v255, 4294967272
        %v275 = vlaneseq
        %v276 = vshrl.u32 %v275, 7
        %v277 = vsub.s32 %v274, %v276
        %v278 = vrot.slane %v232, %v277
        %vm279 = vcmask 261312
        %v280 = vsel %vm279, %v278, %v273
        %v281 = vadd.s32 %v255, 4294967264
        %v282 = vlaneseq
        %v283 = vshrl.u32 %v282, 7
        %v284 = vsub.s32 %v281, %v283
        %v285 = vrot.slane %v233, %v284
        %vm286 = vcmask 326912
        %v287 = vsel %vm286, %v285, %v280
        %v288 = vadd.s32 %v255, 4294967256
        %v289 = vlaneseq
        %v290 = vshrl.u32 %v289, 7
        %v291 = vsub.s32 %v288, %v290
        %v292 = vrot.slane %v234, %v291
        %vm293 = vcmask 392512
        %v294 = vsel %vm293, %v292, %v287
        %v295 = vadd.s32 %v255, 4294967248
        %v296 = vlaneseq
        %v297 = vshrl.u32 %v296, 7
        %v298 = vsub.s32 %v295, %v297
        %v299 = vrot.slane %v235, %v298
        %vm300 = vcmask 458112
        %v301 = vsel %vm300, %v299, %v294
        %v302 = vadd.s32 %v255, 4294967240
        %v303 = vlaneseq
        %v304 = vshrl.u32 %v303, 7
        %v305 = vsub.s32 %v302, %v304
        %v306 = vrot.slane %v236, %v305
        %vm307 = vcmask 523712
        %v308 = vsel %vm307, %v306, %v301
        %vm309 = vcmask 523264
        %v310 = vsel %vm309, %v308, 0
        %v313 = vsel %vm309, %v237, 0
        %315 = vmatprep.subr.mxu0 0.0
        %316 = vmatpush1.xpose.msra.mxu0 %v313
        %317 = vmatprep.subr.mxu0 0.0
        %318 = vmatpush1.xpose.msra.mxu0 0.0
        %319 = vmatprep.subr.mxu0 0.0
        %320 = vmatpush1.xpose.msra.mxu0 0.0
        %321 = vmatprep.subr.mxu0 0.0
        %322 = vmatpush1.xpose.msra.mxu0 0.0
        %323 = vmatprep.subr.mxu0 0.0
        %324 = vmatpush1.xpose.msra.mxu0 0.0
        %325 = vmatprep.subr.mxu0 0.0
        %326 = vmatpush1.xpose.msra.mxu0 0.0
        %327 = vmatprep.subr.mxu0 0.0
        %328 = vmatpush1.xpose.msra.mxu0 0.0
        %329 = vmatprep.subr.mxu0 0.0
        %330 = vmatpush1.xpose.msra.mxu0 0.0
        %331 = vmatprep.subr.mxu0 0.0
        %332 = vmatpush1.xpose.msra.mxu0 0.0
        %333 = vmatprep.subr.mxu0 0.0
        %334 = vmatpush1.xpose.msra.mxu0 0.0
        %335 = vmatprep.subr.mxu0 0.0
        %336 = vmatpush1.xpose.msra.mxu0 0.0
        %337 = vmatprep.subr.mxu0 0.0
        %338 = vmatpush1.xpose.msra.mxu0 0.0
        %339 = vmatprep.subr.mxu0 0.0
        %340 = vmatpush1.xpose.msra.mxu0 0.0
        %341 = vmatprep.subr.mxu0 0.0
        %342 = vmatpush1.xpose.msra.mxu0 0.0
        %343 = vmatprep.subr.mxu0 0.0
        %344 = vmatpush1.xpose.msra.mxu0 0.0
        %345 = vmatprep.subr.mxu0 0.0
        %346 = vmatpush1.xpose.msra.mxu0 0.0
        %347 = vmatprep.subr.mxu0 0.0
        %348 = vmatpush1.xpose.msra.mxu0 0.0
        %349 = vmatprep.subr.mxu0 0.0
        %350 = vmatpush1.xpose.msra.mxu0 0.0
        %351 = vmatprep.subr.mxu0 0.0
        %352 = vmatpush1.xpose.msra.mxu0 0.0
        %353 = vmatprep.subr.mxu0 0.0
        %354 = vmatpush1.xpose.msra.mxu0 0.0
        %355 = vmatprep.subr.mxu0 0.0
        %356 = vmatpush1.xpose.msra.mxu0 0.0
        %357 = vmatprep.subr.mxu0 0.0
        %358 = vmatpush1.xpose.msra.mxu0 0.0
        %359 = vmatprep.subr.mxu0 0.0
        %360 = vmatpush1.xpose.msra.mxu0 0.0
        %361 = vmatprep.subr.mxu0 0.0
        %362 = vmatpush1.xpose.msra.mxu0 0.0
        %363 = vmatprep.subr.mxu0 0.0
        %364 = vmatpush1.xpose.msra.mxu0 0.0
        %365 = vmatprep.subr.mxu0 0.0
        %366 = vmatpush1.xpose.msra.mxu0 0.0
        %367 = vmatprep.subr.mxu0 0.0
        %368 = vmatpush1.xpose.msra.mxu0 0.0
        %369 = vmatprep.subr.mxu0 0.0
        %370 = vmatpush1.xpose.msra.mxu0 0.0
        %371 = vmatprep.subr.mxu0 0.0
        %372 = vmatpush1.xpose.msra.mxu0 0.0
        %373 = vmatprep.subr.mxu0 0.0
        %374 = vmatpush1.xpose.msra.mxu0 0.0
        %375 = vmatprep.subr.mxu0 0.0
        %376 = vmatpush1.xpose.msra.mxu0 0.0
        %377 = vmatprep.subr.mxu0 0.0
        %378 = vmatpush1.xpose.msra.mxu0 0.0
        %379 = vmatprep.mubr.f32.mxu0 0.0
        %380 = vmatmul.mubr.f32.gmra.mrb[0].mxu0 %v310
        %v381 = vpop.f32.mrb[0].mxu0
        %v382 = vadd.f32 0.0, %v381
        %v383 = vpop.f32.mrb[0].mxu0
        %384 = vdwg.mxu0
        %v385 = vmax.f32 %v382, 0.0
        %vm386 = vcmask 31744
        %v388 = vsel %vm386, %v385, 0
        %v391 = vsel %vm386, %v238, 0
        %v394 = vsel %vm386, %v239, 0
        %v397 = vsel %vm386, %v240, 0
        %v400 = vsel %vm386, %v241, 0
        %v403 = vsel %vm386, %v242, 0
        %v406 = vsel %vm386, %v243, 0
        %v409 = vsel %vm386, %v244, 0
        %v412 = vsel %vm386, %v245, 0
        %414 = vmatprep.subr.mxu0 0.0
        %415 = vmatpush1.xpose.msra.mxu0 %v391
        %416 = vmatprep.subr.mxu0 0.0
        %417 = vmatpush1.xpose.msra.mxu0 %v394
        %418 = vmatprep.subr.mxu0 0.0
        %419 = vmatpush1.xpose.msra.mxu0 %v397
        %420 = vmatprep.subr.mxu0 0.0
        %421 = vmatpush1.xpose.msra.mxu0 %v400
        %422 = vmatprep.subr.mxu0 0.0
        %423 = vmatpush1.xpose.msra.mxu0 %v403
        %424 = vmatprep.subr.mxu0 0.0
        %425 = vmatpush1.xpose.msra.mxu0 %v406
        %426 = vmatprep.subr.mxu0 0.0
        %427 = vmatpush1.xpose.msra.mxu0 %v409
        %428 = vmatprep.subr.mxu0 0.0
        %429 = vmatpush1.xpose.msra.mxu0 %v412
        %430 = vmatprep.subr.mxu0 0.0
        %431 = vmatpush1.xpose.msra.mxu0 0.0
        %432 = vmatprep.subr.mxu0 0.0
        %433 = vmatpush1.xpose.msra.mxu0 0.0
        %434 = vmatprep.subr.mxu0 0.0
        %435 = vmatpush1.xpose.msra.mxu0 0.0
        %436 = vmatprep.subr.mxu0 0.0
        %437 = vmatpush1.xpose.msra.mxu0 0.0
        %438 = vmatprep.subr.mxu0 0.0
        %439 = vmatpush1.xpose.msra.mxu0 0.0
        %440 = vmatprep.subr.mxu0 0.0
        %441 = vmatpush1.xpose.msra.mxu0 0.0
        %442 = vmatprep.subr.mxu0 0.0
        %443 = vmatpush1.xpose.msra.mxu0 0.0
        %444 = vmatprep.subr.mxu0 0.0
        %445 = vmatpush1.xpose.msra.mxu0 0.0
        %446 = vmatprep.subr.mxu0 0.0
        %447 = vmatpush1.xpose.msra.mxu0 0.0
        %448 = vmatprep.subr.mxu0 0.0
        %449 = vmatpush1.xpose.msra.mxu0 0.0
        %450 = vmatprep.subr.mxu0 0.0
        %451 = vmatpush1.xpose.msra.mxu0 0.0
        %452 = vmatprep.subr.mxu0 0.0
        %453 = vmatpush1.xpose.msra.mxu0 0.0
        %454 = vmatprep.subr.mxu0 0.0
        %455 = vmatpush1.xpose.msra.mxu0 0.0
        %456 = vmatprep.subr.mxu0 0.0
        %457 = vmatpush1.xpose.msra.mxu0 0.0
        %458 = vmatprep.subr.mxu0 0.0
        %459 = vmatpush1.xpose.msra.mxu0 0.0
        %460 = vmatprep.subr.mxu0 0.0
        %461 = vmatpush1.xpose.msra.mxu0 0.0
        %462 = vmatprep.subr.mxu0 0.0
        %463 = vmatpush1.xpose.msra.mxu0 0.0
        %464 = vmatprep.subr.mxu0 0.0
        %465 = vmatpush1.xpose.msra.mxu0 0.0
        %466 = vmatprep.subr.mxu0 0.0
        %467 = vmatpush1.xpose.msra.mxu0 0.0
        %468 = vmatprep.subr.mxu0 0.0
        %469 = vmatpush1.xpose.msra.mxu0 0.0
        %470 = vmatprep.subr.mxu0 0.0
        %471 = vmatpush1.xpose.msra.mxu0 0.0
        %472 = vmatprep.subr.mxu0 0.0
        %473 = vmatpush1.xpose.msra.mxu0 0.0
        %474 = vmatprep.subr.mxu0 0.0
        %475 = vmatpush1.xpose.msra.mxu0 0.0
        %476 = vmatprep.subr.mxu0 0.0
        %477 = vmatpush1.xpose.msra.mxu0 0.0
        %478 = vmatprep.mubr.f32.mxu0 0.0
        %479 = vmatmul.mubr.f32.gmra.mrb[0].mxu0 %v388
        %v480 = vpop.f32.mrb[0].mxu0
        %v481 = vadd.f32 0.0, %v480
        %v482 = vpop.f32.mrb[0].mxu0
        %483 = vdwg.mxu0
        %v484 = vxor.u32 %v481, 2147483648
        %v485 = vmul.f32 %v484, 1.442695
        %v486 = vpow.pop %v485
        %v487 = vadd.f32 %v486, 1.0
        %v488 = vrcp.pop %v487
        %v489 = vmul.f32 1.0, %v488
        %v490 = vlaneseq
        %v491 = vshrl.u32 %v490, 7
        %v492 = vsub.s32 0, %v491
        %v493 = vrot.slane %v489, %v492
        %495 = vbcast.lane.b32.xlu0 %v493, 256
        %v496 = vpop.permute.xlu0 %495
        %s498 = sor.u32 256, 8
        %499 = vbcast.lane.b32.xlu0 %v493, %s498
        %v500 = vpop.permute.xlu0 %499
        %s502 = sor.u32 256, 16
        %503 = vbcast.lane.b32.xlu0 %v493, %s502
        %v504 = vpop.permute.xlu0 %503
        %s506 = sor.u32 256, 24
        %507 = vbcast.lane.b32.xlu0 %v493, %s506
        %v508 = vpop.permute.xlu0 %507
        %s510 = sor.u32 256, 32
        %511 = vbcast.lane.b32.xlu0 %v493, %s510
        %v512 = vpop.permute.xlu0 %511
        %s514 = sor.u32 256, 40
        %515 = vbcast.lane.b32.xlu0 %v493, %s514
        %v516 = vpop.permute.xlu0 %515
        %s518 = sor.u32 256, 48
        %519 = vbcast.lane.b32.xlu0 %v493, %s518
        %v520 = vpop.permute.xlu0 %519
        %s522 = sor.u32 256, 56
        %523 = vbcast.lane.b32.xlu0 %v493, %s522
        %v524 = vpop.permute.xlu0 %523
        %v525 = vmul.f32 %v189, %v496
        %v526 = vmul.f32 %v190, %v496
        %v527 = vmul.f32 %v191, %v500
        %v528 = vmul.f32 %v192, %v500
        %v529 = vmul.f32 %v193, %v504
        %v530 = vmul.f32 %v194, %v504
        %v531 = vmul.f32 %v195, %v508
        %v532 = vmul.f32 %v196, %v508
        %v533 = vmul.f32 %v197, %v512
        %v534 = vmul.f32 %v198, %v512
        %v535 = vmul.f32 %v199, %v516
        %v536 = vmul.f32 %v200, %v516
        %v537 = vmul.f32 %v201, %v520
        %v538 = vmul.f32 %v202, %v520
        %v539 = vmul.f32 %v203, %v524
        %v540 = vmul.f32 %v204, %v524
        %541 = vst [vmem:[%s188] sm:$0xff] %v525
        %542 = vst [vmem:[%s188 + $0x8] sm:$0xff] %v526
        %543 = vst [vmem:[%s188 + $0x10] sm:$0xff] %v527
        %544 = vst [vmem:[%s188 + $0x18] sm:$0xff] %v528
        %545 = vst [vmem:[%s188 + $0x20] sm:$0xff] %v529
        %546 = vst [vmem:[%s188 + $0x28] sm:$0xff] %v530
        %547 = vst [vmem:[%s188 + $0x30] sm:$0xff] %v531
        %548 = vst [vmem:[%s188 + $0x38] sm:$0xff] %v532
        %549 = vst [vmem:[%s188 + $0x40] sm:$0xff] %v533
        %550 = vst [vmem:[%s188 + $0x48] sm:$0xff] %v534
        %551 = vst [vmem:[%s188 + $0x50] sm:$0xff] %v535
        %552 = vst [vmem:[%s188 + $0x58] sm:$0xff] %v536
        %553 = vst [vmem:[%s188 + $0x60] sm:$0xff] %v537
        %554 = vst [vmem:[%s188 + $0x68] sm:$0xff] %v538
        %555 = vst [vmem:[%s188 + $0x70] sm:$0xff] %v539
        %556 = vst [vmem:[%s188 + $0x78] sm:$0xff] %v540
        %s557 = sand.u32 %s96, 1
        %s558 = scalar_lea.sflag [#allocation4], %s557
        %s559 = sand.u32 %s96, 1
        %s560 = smul.addr %s559, 128
        %s561 = scalar_lea.vmem [#allocation5], %s560
        // Predicated region
        $region37: #{tpu_custom_call.1} parent=31 // pred_check
          %p562 = pneg %p106
        $region38: #{tpu_custom_call.1} parent=31 // pred_check_branch
          %564 = sbr.rel (%p562) target = $region40
        $region39: #{tpu_custom_call.1} parent=31 // pred_region
          %s566 = ssub.s32 2048, 2048
          %567 = vsyncadd %s558, %s566
          %s568 = smul.addr %s20, 16
          %s569 = smul.addr %s568, 128
          %s570 = scalar_lea.hbm %s3, %s569
          %s571 = sshll.u32 %s561, 4
          %s572 = int_to_ptr.vmem [resolvable:$true] %s571
          %577 = dma.vmem_to_hbm [thread:$0]  %s572, 2048, %s570, %s558, 256, 256, 16
        $region40: #{tpu_custom_call.1} parent=31 // pred_fallthru
          _
      $region32: #{tpu_custom_call.1} parent=5 // pred_fallthru
        _
      %p578 = scmp.le.s32.totalorder 2, %s15
      // Predicated region
      $region41: #{tpu_custom_call.1} parent=5 // pred_check
        %p579 = pneg %p578
      $region42: #{tpu_custom_call.1} parent=5 // pred_check_branch
        %581 = sbr.rel (%p579) target = $region44
      $region43: #{tpu_custom_call.1} parent=5 // pred_region
        %s582 = ssub.s32 %s15, 2
        // Predicated region
        $region45: #{tpu_custom_call.1} parent=43 // pred_check
          %p583 = pneg %p112
        $region46: #{tpu_custom_call.1} parent=43 // pred_check_branch
          %585 = sbr.rel (%p583) target = $region48
        $region47: #{tpu_custom_call.1} parent=43 // pred_region
          %s586 = sand.u32 %s97, 1
          %s587 = scalar_lea.sflag [#allocation4], %s586
          %s588 = sand.u32 %s97, 1
          %s589 = smul.addr %s588, 128
          %s590 = scalar_lea.vmem [#allocation5], %s589
          %591 = dma.done %s587, 2048
        $region48: #{tpu_custom_call.1} parent=43 // pred_fallthru
          _
      $region44: #{tpu_custom_call.1} parent=5 // pred_fallthru
        _
    $region6: #{tpu_custom_call.1} parent=1 // loop_footer
      %s19 = sadd.s32 1, %s15
    $region7: #{tpu_custom_call.1} parent=1 // loop_footer_branch
      %14 = sbr.rel target = $region3
    $region8: #{tpu_custom_call.1} parent=1 // loop_exit
      _
    %592 = vsyncpa [#allocation3], 1
    %s593 = scalar_lea.sflag [#allocation3], 1
    %594 = vsyncpa %s593, 1
    %595 = vsyncpa [#allocation4], 1
    %s596 = scalar_lea.sflag [#allocation4], 1
    %597 = vsyncpa %s596, 1

</llo_original>
